<compile_context>
chip_gen: v7x
topology: tpu7x:2x2x1
jax: 0.10.0
libtpu: 0.0.40
codegen_flags: <defaults>
</compile_context>

<pallas_src>
import functools

import jax
import jax.numpy as jnp
from jax.experimental import pallas as pl
from jax.experimental.pallas import tpu as pltpu

TSL_EPSILON = 1e-8  # tsl.epsilon
_LANE = 128
_FUSED_VMEM_BUDGET = 12 * 1024 * 1024   # choose the fused single-block path below this
_FUSED_VMEM_LIMIT = 40 * 1024 * 1024    # scoped VMEM for the fused kernel (< v7x 64 MiB)
_TILED_VMEM_LIMIT = 40 * 1024 * 1024    # scoped VMEM for the tiled kernels


def ensure_list(x):
    if isinstance(x, (list, tuple)):
        return list(x)
    return [x]


def _round_up(x, m):
    return (x + m - 1) // m * m


def _fused_vmem_estimate(n, h, e):
    # Rough f32 footprint of the fused single-block kernel: adjacency copies,
    # one-hot incidence matrices, emb, and the in/out buffers.
    return 4 * (8 * n * n + 6 * e * n + 3 * n * h + 6 * e + 2 * h)


# ---------------------------------------------------------------------------
# Fused small-graph kernel: edge list -> dense adj -> sym -> normalize + mean.
# ---------------------------------------------------------------------------
def _fused_kernel(src_ref, dst_ref, w_ref, emb_ref, adj_ref, mean_ref):
    n = adj_ref.shape[0]
    e = src_ref.shape[1]
    src = src_ref[...]                                   # (1, E) int32
    dst = dst_ref[...]                                   # (1, E) int32
    w = w_ref[...].astype(jnp.float32)                   # (1, E) f32

    # Transposed one-hot incidence matrices, built on the VPU.
    node = jax.lax.broadcasted_iota(jnp.int32, (n, e), 0)
    onehot_src_t = (node == src).astype(jnp.float32)     # (N, E)
    onehot_dst_t = (node == dst).astype(jnp.float32)     # (N, E)

    # Dense adjacency (and its transpose) as MXU "NT" contractions over edges;
    # duplicates scatter-add via the contraction.  fp32 contract precision keeps
    # the edge weights exact to f32 (no bf16 downcast).
    nt = (((1,), (1,)), ((), ()))
    a = jax.lax.dot_general(onehot_src_t * w, onehot_dst_t, nt,
                            precision=jax.lax.Precision.HIGHEST,
                            preferred_element_type=jnp.float32)    # A[i, j]
    a_t = jax.lax.dot_general(onehot_dst_t * w, onehot_src_t, nt,
                              precision=jax.lax.Precision.HIGHEST,
                              preferred_element_type=jnp.float32)  # A[j, i]

    sym = jnp.maximum(a, a_t)                            # adj = max(adj, adj.T)
    # Row and column degree sums (sym is symmetric, so they are the same values;
    # the dual reduction avoids any in-kernel transpose of the degree vector).
    d_row = jnp.sum(sym, axis=-1, keepdims=True)         # (N, 1)
    d_col = jnp.sum(sym, axis=-2, keepdims=True)         # (1, N)
    dinv_r = 1.0 / (jnp.sqrt(d_row) + TSL_EPSILON)       # exact (per review note)
    dinv_c = 1.0 / (jnp.sqrt(d_col) + TSL_EPSILON)
    adj_ref[...] = (dinv_r * sym * dinv_c).astype(adj_ref.dtype)

    emb = emb_ref[...].astype(jnp.float32)
    mean_ref[...] = (jnp.sum(emb, axis=-2, keepdims=True) *
                     (1.0 / emb.shape[0])).astype(mean_ref.dtype)


@jax.jit
def _fused_forward(edge_index, edge_weight, emb):
    n, h = emb.shape
    e = edge_index.shape[1]
    src = edge_index[0].reshape(1, e).astype(jnp.int32)
    dst = edge_index[1].reshape(1, e).astype(jnp.int32)
    w = edge_weight.reshape(1, e).astype(emb.dtype)

    flops = int(4 * n * n * e + 8 * n * n + 2 * n * h)
    bytes_accessed = int(4 * (3 * e + n * h + n * n + h))
    return pl.pallas_call(
        _fused_kernel,
        out_shape=(jax.ShapeDtypeStruct((n, n), emb.dtype),
                   jax.ShapeDtypeStruct((1, h), emb.dtype)),
        grid=(1,),
        in_specs=[pl.BlockSpec((1, e), lambda i: (0, 0)),
                  pl.BlockSpec((1, e), lambda i: (0, 0)),
                  pl.BlockSpec((1, e), lambda i: (0, 0)),
                  pl.BlockSpec((n, h), lambda i: (0, 0))],
        out_specs=(pl.BlockSpec((n, n), lambda i: (0, 0)),
                   pl.BlockSpec((1, h), lambda i: (0, 0))),
        compiler_params=pltpu.CompilerParams(
            dimension_semantics=("arbitrary",),
            vmem_limit_bytes=_FUSED_VMEM_LIMIT),
        cost_estimate=pl.CostEstimate(flops=flops, transcendentals=2 * n,
                                      bytes_accessed=bytes_accessed),
    )(src, dst, w, emb)


# ---------------------------------------------------------------------------
# Tiled large-graph kernels: degree pass + normalize pass + node mean.
# ---------------------------------------------------------------------------
def _degree_kernel(a_ref, at_ref, d_ref):
    # Row sums of sym = max(A, A.T); the column (reduction) axis is last.
    @pl.when(pl.program_id(1) == 0)
    def _():
        d_ref[...] = jnp.zeros_like(d_ref)
    sym = jnp.maximum(a_ref[...], at_ref[...].T)
    d_ref[...] += jnp.sum(sym, axis=-1, keepdims=True)


def _normalize_kernel(a_ref, at_ref, dr_ref, dc_ref, o_ref):
    sym = jnp.maximum(a_ref[...], at_ref[...].T)
    o_ref[...] = (dr_ref[...] * sym * dc_ref[...]).astype(o_ref.dtype)


def _mean_kernel(emb_ref, mean_ref, *, inv_n):
    @pl.when(pl.program_id(0) == 0)
    def _():
        mean_ref[...] = jnp.zeros_like(mean_ref)
    partial = jnp.sum(emb_ref[...].astype(jnp.float32), axis=-2, keepdims=True)
    mean_ref[...] += (partial * inv_n).astype(mean_ref.dtype)


@functools.partial(jax.jit, static_argnames=("tile",))
def _tiled_forward(edge_index, edge_weight, emb, *, tile=512):
    n, h = emb.shape
    # Dense adjacency via XLA scatter-add.  NOTE: the reference's `.T` is
    # dropped: max(A, A.T) is transpose-invariant and the raw (un-normalized)
    # adjacency is never returned, so the transpose was a wasted HBM round trip.
    adj = jnp.zeros((n, n), emb.dtype).at[edge_index[0], edge_index[1]].add(
        edge_weight.astype(emb.dtype))

    n_pad = _round_up(n, tile)
    h_pad = _round_up(h, _LANE)
    if n_pad != n:
        adj = jnp.pad(adj, ((0, n_pad - n), (0, n_pad - n)))
    emb_p = emb
    if n_pad != n or h_pad != h:
        emb_p = jnp.pad(emb, ((0, n_pad - n), (0, h_pad - h)))
    gi = n_pad // tile

    # Pass 1: degrees of sym(adj).  Row-tile axis 'parallel' (uses v7x's two
    # TensorCores), reduction axis last and 'arbitrary'; adj is fed twice with
    # (i, j) / (j, i) index maps so symmetrization works on two DMA'd tiles.
    d = pl.pallas_call(
        _degree_kernel,
        out_shape=jax.ShapeDtypeStruct((n_pad, 1), jnp.float32),
        grid=(gi, gi),
        in_specs=[pl.BlockSpec((tile, tile), lambda i, j: (i, j)),
                  pl.BlockSpec((tile, tile), lambda i, j: (j, i))],
        out_specs=pl.BlockSpec((tile, 1), lambda i, j: (i, 0)),
        compiler_params=pltpu.CompilerParams(
            dimension_semantics=("parallel", "arbitrary"),
            vmem_limit_bytes=_TILED_VMEM_LIMIT),
        cost_estimate=pl.CostEstimate(
            flops=int(3 * n_pad * n_pad), transcendentals=0,
            bytes_accessed=int(8 * n_pad * n_pad + 4 * n_pad)),
    )(adj, adj)

    dinv = 1.0 / (jnp.sqrt(d) + TSL_EPSILON)      # (n_pad, 1), tiny XLA op
    dinv_col = dinv.reshape(1, n_pad)             # lane-major copy for column scaling

    # Pass 2: normalize tile (i, j) with dinv[i] / dinv[j]; no reduction, so
    # both grid axes are 'parallel'.  Output tiles are 128-lane dense.
    adj_norm = pl.pallas_call(
        _normalize_kernel,
        out_shape=jax.ShapeDtypeStruct((n_pad, n_pad), emb.dtype),
        grid=(gi, gi),
        in_specs=[pl.BlockSpec((tile, tile), lambda i, j: (i, j)),
                  pl.BlockSpec((tile, tile), lambda i, j: (j, i)),
                  pl.BlockSpec((tile, 1), lambda i, j: (i, 0)),
                  pl.BlockSpec((1, tile), lambda i, j: (0, j))],
        out_specs=pl.BlockSpec((tile, tile), lambda i, j: (i, j)),
        compiler_params=pltpu.CompilerParams(
            dimension_semantics=("parallel", "parallel"),
            vmem_limit_bytes=_TILED_VMEM_LIMIT),
        cost_estimate=pl.CostEstimate(
            flops=int(4 * n_pad * n_pad), transcendentals=0,
            bytes_accessed=int(12 * n_pad * n_pad)),
    )(adj, adj, dinv, dinv_col)

    # Node mean over the real n rows (padded rows are zero, so the sum is exact;
    # output is a lane-dense (1, h_pad) slab).
    mean = pl.pallas_call(
        functools.partial(_mean_kernel, inv_n=1.0 / n),
        out_shape=jax.ShapeDtypeStruct((1, h_pad), emb.dtype),
        grid=(gi,),
        in_specs=[pl.BlockSpec((tile, h_pad), lambda i: (i, 0))],
        out_specs=pl.BlockSpec((1, h_pad), lambda i: (0, 0)),
        compiler_params=pltpu.CompilerParams(
            dimension_semantics=("arbitrary",)),
        cost_estimate=pl.CostEstimate(
            flops=int(n_pad * h_pad), transcendentals=0,
            bytes_accessed=int(4 * (n_pad * h_pad + h_pad))),
    )(emb_p)

    if n_pad != n:
        adj_norm = adj_norm[:n, :n]
    if h_pad != h:
        mean = mean[:, :h]
    return adj_norm, mean


# ---------------------------------------------------------------------------
# Module wrapper.
# ---------------------------------------------------------------------------
class MinCutHierarchyBuilder:
    """Hierarchy encoder (Pallas TPU port of the PyTorch module)."""

    def __init__(self, n_nodes, hidden_size, n_clusters, n_levels=1,
                 temp_decay=0.99995, hard=True):
        self.n_levels = n_levels
        n_clusters = ensure_list(n_clusters)
        if len(n_clusters) != n_levels - 2:
            assert len(n_clusters) == 1
            n_clusters = n_clusters * max(n_levels - 2, 0)
        # TODO(synk): MinCutPool sub-layers (used only when n_levels > 2) live in
        # an external module not provided here; this port covers n_levels <= 2.
        assert n_levels <= 2, "MinCutPool pooling layers not available in this port"
        self.pooling_layers = []

    def __call__(self, emb, edge_index, edge_weight=None):
        n = emb.shape[-2]
        h = emb.shape[-1]
        e = edge_index.shape[1]
        if edge_weight is None:
            edge_weight = jnp.ones((e,), dtype=emb.dtype)

        if _fused_vmem_estimate(n, h, e) <= _FUSED_VMEM_BUDGET:
            # Small/medium graphs: fully fused single-block kernel.
            adj_norm, emb_mean = _fused_forward(edge_index, edge_weight, emb)
        else:
            # Large graphs: tiled two-pass pipeline that scales past VMEM limits.
            tile = min(512, _round_up(n, _LANE))
            adj_norm, emb_mean = _tiled_forward(edge_index, edge_weight, emb,
                                                tile=tile)

        embs = [emb]
        adjs = [adj_norm]
        selects = [None]
        sizes = [n]
        min_cut_loss = 0.0
        reg_loss = 0.0
        # (no pooling layers for n_levels <= 2)
        embs.append(emb_mean)                       # emb.mean(-2, keepdim=True)
        adjs.append(None)
        s_tot = jnp.ones((sizes[-1], 1), dtype=emb.dtype)
        selects.append(s_tot)
        sizes.append(1)
        return embs, adjs, selects, sizes, (min_cut_loss, reg_loss)


# ---------------------------------------------------------------------------
# Pure-JAX reference (mirrors the PyTorch forward) for correctness checks.
# ---------------------------------------------------------------------------
def _reference_forward(emb, edge_index, edge_weight):
    n = emb.shape[-2]
    adj = jnp.zeros((n, n), emb.dtype).at[edge_index[0], edge_index[1]].add(
        edge_weight).T
    adj = jnp.maximum(adj, adj.T)
    d = jnp.sum(adj, axis=-1, keepdims=True)
    dinv = 1.0 / (jnp.sqrt(d) + TSL_EPSILON)
    adj = dinv * adj * dinv.T
    mean = jnp.mean(emb, axis=-2, keepdims=True)
    return adj, mean


if __name__ == "__main__":
    keys = jax.random.split(jax.random.PRNGKey(0), 8)

    # --- Demo 1: end-to-end builder at the shipped size (fused kernel path). ---
    N, H, E = 16, 32, 48
    emb = jax.random.normal(keys[0], (N, H), dtype=jnp.float32)
    src = jax.random.randint(keys[1], (E,), 0, N, dtype=jnp.int32)
    dst = jax.random.randint(keys[2], (E,), 0, N, dtype=jnp.int32)
    edge_index = jnp.stack([src, dst], axis=0)                 # (2, E)
    edge_weight = jax.random.uniform(keys[3], (E,), dtype=jnp.float32)

    builder = MinCutHierarchyBuilder(n_nodes=N, hidden_size=H,
                                     n_clusters=8, n_levels=2)
    embs, adjs, selects, sizes, (mc_loss, r_loss) = builder(emb, edge_index,
                                                            edge_weight)
    jax.block_until_ready(adjs[0])
    jax.block_until_ready(embs[1])
    jax.block_until_ready(selects[1])

    assert embs[0].shape == (N, H)
    assert embs[1].shape == (1, H)
    assert adjs[0].shape == (N, N)
    assert selects[1].shape == (N, 1)
    assert sizes == [N, 1]
    assert adjs[1] is None and selects[0] is None
    assert mc_loss == 0.0 and r_loss == 0.0

    ref_adj, ref_mean = _reference_forward(emb, edge_index, edge_weight)
    assert float(jnp.max(jnp.abs(adjs[0] - ref_adj))) < 1e-3
    assert float(jnp.max(jnp.abs(embs[1] - ref_mean))) < 1e-4

    # --- Demo 2: tiled two-pass path (the large-N design), exercised at a small
    #     multi-tile size with padding (N=250 -> 256, H=64 -> 128, tile=128). ---
    N2, H2, E2 = 250, 64, 2000
    emb2 = jax.random.normal(keys[4], (N2, H2), dtype=jnp.float32)
    src2 = jax.random.randint(keys[5], (E2,), 0, N2, dtype=jnp.int32)
    dst2 = jax.random.randint(keys[6], (E2,), 0, N2, dtype=jnp.int32)
    edge_index2 = jnp.stack([src2, dst2], axis=0)
    edge_weight2 = jax.random.uniform(keys[7], (E2,), dtype=jnp.float32)

    adj_norm2, mean2 = _tiled_forward(edge_index2, edge_weight2, emb2, tile=128)
    jax.block_until_ready(adj_norm2)
    jax.block_until_ready(mean2)

    assert adj_norm2.shape == (N2, N2) and mean2.shape == (1, H2)
    ref_adj2, ref_mean2 = _reference_forward(emb2, edge_index2, edge_weight2)
    assert float(jnp.max(jnp.abs(adj_norm2 - ref_adj2))) < 1e-4
    assert float(jnp.max(jnp.abs(mean2 - ref_mean2))) < 1e-4

    print("KERNEL_OK")
</pallas_src>

<mosaic_0001>
module attributes {stable_mosaic.version = 11 : i64} {
  func.func @_fused_kernel(%arg0: i32, %arg1: memref<1x48xi32, #tpu.memory_space<vmem>>, %arg2: memref<1x48xi32, #tpu.memory_space<vmem>>, %arg3: memref<1x48xf32, #tpu.memory_space<vmem>>, %arg4: memref<16x32xf32, #tpu.memory_space<vmem>>, %arg5: memref<16x16xf32, #tpu.memory_space<vmem>>, %arg6: memref<1x32xf32, #tpu.memory_space<vmem>>) attributes {dimension_semantics = [#tpu.dimension_semantics<arbitrary>], iteration_bounds = array<i64: 1>, scalar_prefetch = 0 : i64, scratch_operands = 0 : i64, tpu.core_type = #tpu.core_type<tc>, window_params = [{pipeline_mode = #tpu.pipeline_mode<synchronous>, transform_indices = @transform_0, window_bounds = array<i64: 1, 48>}, {pipeline_mode = #tpu.pipeline_mode<synchronous>, transform_indices = @transform_1, window_bounds = array<i64: 1, 48>}, {pipeline_mode = #tpu.pipeline_mode<synchronous>, transform_indices = @transform_2, window_bounds = array<i64: 1, 48>}, {pipeline_mode = #tpu.pipeline_mode<synchronous>, transform_indices = @transform_3, window_bounds = array<i64: 16, 32>}, {pipeline_mode = #tpu.pipeline_mode<synchronous>, transform_indices = @transform_4, window_bounds = array<i64: 16, 16>}, {pipeline_mode = #tpu.pipeline_mode<synchronous>, transform_indices = @transform_5, window_bounds = array<i64: 1, 32>}]} {
    %c0 = arith.constant 0 : index
    %c0_0 = arith.constant 0 : index
    %0 = vector.load %arg1[%c0, %c0_0] : memref<1x48xi32, #tpu.memory_space<vmem>>, vector<1x48xi32>
    %c0_1 = arith.constant 0 : index
    %c0_2 = arith.constant 0 : index
    %1 = vector.load %arg2[%c0_1, %c0_2] : memref<1x48xi32, #tpu.memory_space<vmem>>, vector<1x48xi32>
    %c0_3 = arith.constant 0 : index
    %c0_4 = arith.constant 0 : index
    %2 = vector.load %arg3[%c0_3, %c0_4] : memref<1x48xf32, #tpu.memory_space<vmem>>, vector<1x48xf32>
    %3 = tpu.iota {dimensions = array<i32: 0>} : vector<16x48xi32>
    %4 = vector.broadcast %0 : vector<1x48xi32> to vector<16x48xi32>
    %5 = arith.cmpi eq, %3, %4 : vector<16x48xi32>
    %6 = arith.extui %5 : vector<16x48xi1> to vector<16x48xi32>
    %7 = arith.sitofp %6 : vector<16x48xi32> to vector<16x48xf32>
    %8 = vector.broadcast %1 : vector<1x48xi32> to vector<16x48xi32>
    %9 = arith.cmpi eq, %3, %8 : vector<16x48xi32>
    %10 = arith.extui %9 : vector<16x48xi1> to vector<16x48xi32>
    %11 = arith.sitofp %10 : vector<16x48xi32> to vector<16x48xf32>
    %12 = vector.broadcast %2 : vector<1x48xf32> to vector<16x48xf32>
    %13 = arith.mulf %7, %12 : vector<16x48xf32>
    %cst = arith.constant dense<0.000000e+00> : vector<16x16xf32>
    %14 = tpu.matmul %13, %11, %cst {dimension_numbers = #tpu.dot_dimension_numbers<[1], [1], [0], [0], [0, 0, 1, 0], [], []>, precision = #tpu.contract_precision<fp32>} : vector<16x48xf32>, vector<16x48xf32>, vector<16x16xf32> -> vector<16x16xf32>
    %15 = vector.broadcast %2 : vector<1x48xf32> to vector<16x48xf32>
    %16 = arith.mulf %11, %15 : vector<16x48xf32>
    %cst_5 = arith.constant dense<0.000000e+00> : vector<16x16xf32>
    %17 = tpu.matmul %16, %7, %cst_5 {dimension_numbers = #tpu.dot_dimension_numbers<[1], [1], [0], [0], [0, 0, 1, 0], [], []>, precision = #tpu.contract_precision<fp32>} : vector<16x48xf32>, vector<16x48xf32>, vector<16x16xf32> -> vector<16x16xf32>
    %18 = arith.maximumf %14, %17 : vector<16x16xf32>
    %cst_6 = arith.constant dense<0.000000e+00> : vector<16xf32>
    %19 = vector.multi_reduction <add>, %18, %cst_6 [1] : vector<16x16xf32> to vector<16xf32>
    %20 = vector.shape_cast %19 : vector<16xf32> to vector<16x1xf32>
    %cst_7 = arith.constant dense<0.000000e+00> : vector<16xf32>
    %21 = vector.multi_reduction <add>, %18, %cst_7 [0] : vector<16x16xf32> to vector<16xf32>
    %22 = vector.shape_cast %21 : vector<16xf32> to vector<1x16xf32>
    %23 = math.sqrt %20 : vector<16x1xf32>
    %cst_8 = arith.constant 9.99999993E-9 : f32
    %24 = vector.broadcast %cst_8 : f32 to vector<16x1xf32>
    %25 = arith.addf %23, %24 : vector<16x1xf32>
    %cst_9 = arith.constant 1.000000e+00 : f32
    %26 = vector.broadcast %cst_9 : f32 to vector<16x1xf32>
    %27 = arith.divf %26, %25 : vector<16x1xf32>
    %28 = math.sqrt %22 : vector<1x16xf32>
    %cst_10 = arith.constant 9.99999993E-9 : f32
    %29 = vector.broadcast %cst_10 : f32 to vector<1x16xf32>
    %30 = arith.addf %28, %29 : vector<1x16xf32>
    %cst_11 = arith.constant 1.000000e+00 : f32
    %31 = vector.broadcast %cst_11 : f32 to vector<1x16xf32>
    %32 = arith.divf %31, %30 : vector<1x16xf32>
    %33 = vector.broadcast %27 : vector<16x1xf32> to vector<16x16xf32>
    %34 = arith.mulf %33, %18 : vector<16x16xf32>
    %35 = vector.broadcast %32 : vector<1x16xf32> to vector<16x16xf32>
    %36 = arith.mulf %34, %35 : vector<16x16xf32>
    %c0_12 = arith.constant 0 : index
    %c0_13 = arith.constant 0 : index
    %37 = vector.load %arg5[%c0_12, %c0_13] : memref<16x16xf32, #tpu.memory_space<vmem>>, vector<16x16xf32>
    tpu.vector_store %arg5[%c0_12, %c0_13], %36 {strides = array<i32>} : memref<16x16xf32, #tpu.memory_space<vmem>>, vector<16x16xf32>,
    %c0_14 = arith.constant 0 : index
    %c0_15 = arith.constant 0 : index
    %38 = vector.load %arg4[%c0_14, %c0_15] : memref<16x32xf32, #tpu.memory_space<vmem>>, vector<16x32xf32>
    %cst_16 = arith.constant dense<0.000000e+00> : vector<32xf32>
    %39 = vector.multi_reduction <add>, %38, %cst_16 [0] : vector<16x32xf32> to vector<32xf32>
    %40 = vector.shape_cast %39 : vector<32xf32> to vector<1x32xf32>
    %cst_17 = arith.constant 6.250000e-02 : f32
    %41 = vector.broadcast %cst_17 : f32 to vector<1x32xf32>
    %42 = arith.mulf %40, %41 : vector<1x32xf32>
    %c0_18 = arith.constant 0 : index
    %c0_19 = arith.constant 0 : index
    %43 = vector.load %arg6[%c0_18, %c0_19] : memref<1x32xf32, #tpu.memory_space<vmem>>, vector<1x32xf32>
    tpu.vector_store %arg6[%c0_18, %c0_19], %42 {strides = array<i32>} : memref<1x32xf32, #tpu.memory_space<vmem>>, vector<1x32xf32>,
    return
  }
  func.func @transform_0(%arg0: i32) -> (i32, i32) {
    %c0_i32 = arith.constant 0 : i32
    %c0_i32_0 = arith.constant 0 : i32
    %c0_i32_1 = arith.constant 0 : i32
    return %c0_i32, %c0_i32_0 : i32, i32
  }
  func.func @transform_1(%arg0: i32) -> (i32, i32) {
    %c0_i32 = arith.constant 0 : i32
    %c0_i32_0 = arith.constant 0 : i32
    %c0_i32_1 = arith.constant 0 : i32
    return %c0_i32, %c0_i32_0 : i32, i32
  }
  func.func @transform_2(%arg0: i32) -> (i32, i32) {
    %c0_i32 = arith.constant 0 : i32
    %c0_i32_0 = arith.constant 0 : i32
    %c0_i32_1 = arith.constant 0 : i32
    return %c0_i32, %c0_i32_0 : i32, i32
  }
  func.func @transform_3(%arg0: i32) -> (i32, i32) {
    %c0_i32 = arith.constant 0 : i32
    %c0_i32_0 = arith.constant 0 : i32
    %c0_i32_1 = arith.constant 0 : i32
    return %c0_i32, %c0_i32_0 : i32, i32
  }
  func.func @transform_4(%arg0: i32) -> (i32, i32) {
    %c0_i32 = arith.constant 0 : i32
    %c0_i32_0 = arith.constant 0 : i32
    %c0_i32_1 = arith.constant 0 : i32
    return %c0_i32, %c0_i32_0 : i32, i32
  }
  func.func @transform_5(%arg0: i32) -> (i32, i32) {
    %c0_i32 = arith.constant 0 : i32
    %c0_i32_0 = arith.constant 0 : i32
    %c0_i32_1 = arith.constant 0 : i32
    return %c0_i32, %c0_i32_0 : i32, i32
  }
}

</mosaic_0001>

<llo_original>
// kernel: _fused_forward.1
$region0: #{_fused_forward.1}
  #allocation0 [shape = 'u32[]', space=smem, size = 0x4, offset = 0x4, fixed_abs, tag = 'smem constant byte address 0x4 - core index']
  #allocation1 [shape = 'u32[144,128]{1,0:T(1,128)}', space=vmem, size = 0x12000, scoped, tag = 'internal scratch']
  %s0 = inlined_call_operand.vmem [shape: s32[1,48], index: 0, kind: input, shape index: {}]
  %s1 = inlined_call_operand.vmem [shape: s32[1,48], index: 1, kind: input, shape index: {}]
  %s2 = inlined_call_operand.vmem [shape: f32[1,48], index: 2, kind: input, shape index: {}]
  %s3 = inlined_call_operand.vmem [shape: f32[16,32], index: 3, kind: input, shape index: {}]
  %s4 = inlined_call_operand.hbm [shape: f32[16,16], index: 4, kind: output, shape index: {0}]
  %s5 = inlined_call_operand.hbm [shape: f32[1,32], index: 5, kind: output, shape index: {1}]
  %6 = xla_tuple %s4, %s5
  %s7 = sld [smem:[#allocation0]]
  $region34: #{_fused_forward.1} parent=0
    _
  %s9 = ssub.s32 1, %s7
  %s10 = scalar_select 0, %s9, %s7
  $region1: #{_fused_forward.1} parent=0
    #allocation2 [shape = 'u8[8192]{0}', space=vmem, size = 0x2000, scoped, tag = 'output window, operand 0, single buffered']
    #allocation3 [shape = 's32[1]{0}', space=sflag, size = 0x4, scoped, tag = 'scoped memory for _fused_forward.1']
    #allocation4 [shape = 'u8[512]{0}', space=vmem, size = 0x400, scoped, tag = 'output window, operand 1, single buffered']
    #allocation5 [shape = 's32[1]{0}', space=sflag, size = 0x4, scoped, tag = 'scoped memory for _fused_forward.1']
    %11 = vsyncpa [#allocation3], 0
    %12 = vsyncpa [#allocation5], 0
    // Predicated region
    $region2: #{_fused_forward.1} parent=1 // pred_check
      _
    $region3: #{_fused_forward.1} parent=1 // pred_check_branch
      %14 = sbr.rel (0) target = $region5
    $region4: #{_fused_forward.1} parent=1 // pred_region
      _
    $region5: #{_fused_forward.1} parent=1 // pred_fallthru
      _
    // Predicated region
    $region6: #{_fused_forward.1} parent=1 // pred_check
      _
    $region7: #{_fused_forward.1} parent=1 // pred_check_branch
      %16 = sbr.rel (0) target = $region9
    $region8: #{_fused_forward.1} parent=1 // pred_region
      _
    $region9: #{_fused_forward.1} parent=1 // pred_fallthru
      _
    // Predicated region
    $region10: #{_fused_forward.1} parent=1 // pred_check
      _
    $region11: #{_fused_forward.1} parent=1 // pred_check_branch
      %18 = sbr.rel (0) target = $region13
    $region12: #{_fused_forward.1} parent=1 // pred_region
      _
    $region13: #{_fused_forward.1} parent=1 // pred_fallthru
      _
    // Predicated region
    $region14: #{_fused_forward.1} parent=1 // pred_check
      _
    $region15: #{_fused_forward.1} parent=1 // pred_check_branch
      %20 = sbr.rel (0) target = $region17
    $region16: #{_fused_forward.1} parent=1 // pred_region
      _
    $region17: #{_fused_forward.1} parent=1 // pred_fallthru
      _
    %v21 = vld [vmem:[%s0] sm:$0x1]
    %v22 = vld [vmem:[%s1] sm:$0x1]
    %v23 = vld [vmem:[%s2] sm:$0x1]
    %v24 = vlaneseq
    %v25 = vshrl.u32 %v24, 7
    %v26 = vadd.s32 %v25, 8
    %v27 = vlaneseq
    %v28 = vshrl.u32 %v27, 7
    %v29 = vsub.s32 0, %v28
    %v30 = vrot.slane %v21, %v29
    %vm31 = vcmp.eq.s32.totalorder %v25, %v30
    %vm32 = vcmp.eq.s32.totalorder %v26, %v30
    %v33 = vsel %vm31, 1, 0
    %v34 = vsel %vm32, 1, 0
    %v35 = vcvt.s32.f32 %v33
    %v36 = vcvt.s32.f32 %v34
    %v37 = vlaneseq
    %v38 = vshrl.u32 %v37, 7
    %v39 = vsub.s32 0, %v38
    %v40 = vrot.slane %v22, %v39
    %vm41 = vcmp.eq.s32.totalorder %v25, %v40
    %vm42 = vcmp.eq.s32.totalorder %v26, %v40
    %v43 = vsel %vm41, 1, 0
    %v44 = vsel %vm42, 1, 0
    %v45 = vcvt.s32.f32 %v43
    %v46 = vcvt.s32.f32 %v44
    %v48 = vlaneseq
    %v49 = vshrl.u32 %v48, 7
    %v50 = vsub.s32 0, %v49
    %v51 = vrot.slane %v23, %v50
    %v53 = vmul.f32 %v35, %v51
    %v54 = vmul.f32 %v36, %v51
    %vm55 = vcmask 392192
    %v57 = vsel %vm55, %v53, 0
    %v60 = vsel %vm55, %v54, 0
    %v63 = vsel %vm55, %v45, 0
    %v66 = vsel %vm55, %v46, 0
    %68 = vmatprep.subr.mxu0 0.0
    %v69 = vand.u32 %v63, 4294901760
    %70 = vmatpush1.xpose.msra.mxu0 %v69
    %71 = vmatprep.subr.mxu0 0.0
    %v72 = vand.u32 %v66, 4294901760
    %73 = vmatpush1.xpose.msra.mxu0 %v72
    %74 = vmatprep.subr.mxu0 0.0
    %75 = vmatpush1.xpose.msra.mxu0 0.0
    %76 = vmatprep.subr.mxu0 0.0
    %77 = vmatpush1.xpose.msra.mxu0 0.0
    %78 = vmatprep.subr.mxu0 0.0
    %79 = vmatpush1.xpose.msra.mxu0 0.0
    %80 = vmatprep.subr.mxu0 0.0
    %81 = vmatpush1.xpose.msra.mxu0 0.0
    %82 = vmatprep.subr.mxu0 0.0
    %83 = vmatpush1.xpose.msra.mxu0 0.0
    %84 = vmatprep.subr.mxu0 0.0
    %85 = vmatpush1.xpose.msra.mxu0 0.0
    %86 = vmatprep.subr.mxu0 0.0
    %87 = vmatpush1.xpose.msra.mxu0 0.0
    %88 = vmatprep.subr.mxu0 0.0
    %89 = vmatpush1.xpose.msra.mxu0 0.0
    %90 = vmatprep.subr.mxu0 0.0
    %91 = vmatpush1.xpose.msra.mxu0 0.0
    %92 = vmatprep.subr.mxu0 0.0
    %93 = vmatpush1.xpose.msra.mxu0 0.0
    %94 = vmatprep.subr.mxu0 0.0
    %95 = vmatpush1.xpose.msra.mxu0 0.0
    %96 = vmatprep.subr.mxu0 0.0
    %97 = vmatpush1.xpose.msra.mxu0 0.0
    %98 = vmatprep.subr.mxu0 0.0
    %99 = vmatpush1.xpose.msra.mxu0 0.0
    %100 = vmatprep.subr.mxu0 0.0
    %101 = vmatpush1.xpose.msra.mxu0 0.0
    %102 = vmatprep.subr.mxu0 0.0
    %103 = vmatpush1.xpose.msra.mxu0 0.0
    %104 = vmatprep.subr.mxu0 0.0
    %105 = vmatpush1.xpose.msra.mxu0 0.0
    %106 = vmatprep.subr.mxu0 0.0
    %107 = vmatpush1.xpose.msra.mxu0 0.0
    %108 = vmatprep.subr.mxu0 0.0
    %109 = vmatpush1.xpose.msra.mxu0 0.0
    %110 = vmatprep.subr.mxu0 0.0
    %111 = vmatpush1.xpose.msra.mxu0 0.0
    %112 = vmatprep.subr.mxu0 0.0
    %113 = vmatpush1.xpose.msra.mxu0 0.0
    %114 = vmatprep.subr.mxu0 0.0
    %115 = vmatpush1.xpose.msra.mxu0 0.0
    %116 = vmatprep.subr.mxu0 0.0
    %117 = vmatpush1.xpose.msra.mxu0 0.0
    %118 = vmatprep.subr.mxu0 0.0
    %119 = vmatpush1.xpose.msra.mxu0 0.0
    %120 = vmatprep.subr.mxu0 0.0
    %121 = vmatpush1.xpose.msra.mxu0 0.0
    %122 = vmatprep.subr.mxu0 0.0
    %123 = vmatpush1.xpose.msra.mxu0 0.0
    %124 = vmatprep.subr.mxu0 0.0
    %125 = vmatpush1.xpose.msra.mxu0 0.0
    %126 = vmatprep.subr.mxu0 0.0
    %127 = vmatpush1.xpose.msra.mxu0 0.0
    %128 = vmatprep.subr.mxu0 0.0
    %129 = vmatpush1.xpose.msra.mxu0 0.0
    %130 = vmatprep.subr.mxu0 0.0
    %131 = vmatpush1.xpose.msra.mxu0 0.0
    %132 = vmatprep.subr.mxu0 0.0
    %133 = vmatpush1.xpose.msra.mxu0 0.0
    %134 = vmatprep.mubr.f32.mxu0 0.0
    %v135 = vand.u32 %v57, 4294901760
    %v136 = vsub.f32 %v57, %v135
    %v137 = vand.u32 %v136, 4294901760
    %v138 = vsub.f32 %v136, %v137
    %v139 = vand.u32 %v138, 4294901760
    %140 = vmatmul.mubr.f32.gmra.mrb[0].mxu0 %v139
    %v141 = vpop.f32.mrb[0].mxu0
    %v142 = vadd.f32 0.0, %v141
    %v143 = vpop.f32.mrb[0].mxu0
    %144 = vmatprep.mubr.f32.mxu0 0.0
    %v145 = vand.u32 %v60, 4294901760
    %v146 = vsub.f32 %v60, %v145
    %v147 = vand.u32 %v146, 4294901760
    %v148 = vsub.f32 %v146, %v147
    %v149 = vand.u32 %v148, 4294901760
    %150 = vmatmul.mubr.f32.gmra.mrb[0].mxu0 %v149
    %v151 = vpop.f32.mrb[0].mxu0
    %v152 = vadd.f32 0.0, %v151
    %v153 = vpop.f32.mrb[0].mxu0
    %154 = vdwg.mxu0
    %155 = vmatprep.subr.mxu0 0.0
    %v156 = vand.u32 %v63, 4294901760
    %v157 = vsub.f32 %v63, %v156
    %v158 = vand.u32 %v157, 4294901760
    %v159 = vsub.f32 %v157, %v158
    %v160 = vand.u32 %v159, 4294901760
    %161 = vmatpush1.xpose.msra.mxu0 %v160
    %162 = vmatprep.subr.mxu0 0.0
    %v163 = vand.u32 %v66, 4294901760
    %v164 = vsub.f32 %v66, %v163
    %v165 = vand.u32 %v164, 4294901760
    %v166 = vsub.f32 %v164, %v165
    %v167 = vand.u32 %v166, 4294901760
    %168 = vmatpush1.xpose.msra.mxu0 %v167
    %169 = vmatprep.subr.mxu0 0.0
    %170 = vmatpush1.xpose.msra.mxu0 0.0
    %171 = vmatprep.subr.mxu0 0.0
    %172 = vmatpush1.xpose.msra.mxu0 0.0
    %173 = vmatprep.subr.mxu0 0.0
    %174 = vmatpush1.xpose.msra.mxu0 0.0
    %175 = vmatprep.subr.mxu0 0.0
    %176 = vmatpush1.xpose.msra.mxu0 0.0
    %177 = vmatprep.subr.mxu0 0.0
    %178 = vmatpush1.xpose.msra.mxu0 0.0
    %179 = vmatprep.subr.mxu0 0.0
    %180 = vmatpush1.xpose.msra.mxu0 0.0
    %181 = vmatprep.subr.mxu0 0.0
    %182 = vmatpush1.xpose.msra.mxu0 0.0
    %183 = vmatprep.subr.mxu0 0.0
    %184 = vmatpush1.xpose.msra.mxu0 0.0
    %185 = vmatprep.subr.mxu0 0.0
    %186 = vmatpush1.xpose.msra.mxu0 0.0
    %187 = vmatprep.subr.mxu0 0.0
    %188 = vmatpush1.xpose.msra.mxu0 0.0
    %189 = vmatprep.subr.mxu0 0.0
    %190 = vmatpush1.xpose.msra.mxu0 0.0
    %191 = vmatprep.subr.mxu0 0.0
    %192 = vmatpush1.xpose.msra.mxu0 0.0
    %193 = vmatprep.subr.mxu0 0.0
    %194 = vmatpush1.xpose.msra.mxu0 0.0
    %195 = vmatprep.subr.mxu0 0.0
    %196 = vmatpush1.xpose.msra.mxu0 0.0
    %197 = vmatprep.subr.mxu0 0.0
    %198 = vmatpush1.xpose.msra.mxu0 0.0
    %199 = vmatprep.subr.mxu0 0.0
    %200 = vmatpush1.xpose.msra.mxu0 0.0
    %201 = vmatprep.subr.mxu0 0.0
    %202 = vmatpush1.xpose.msra.mxu0 0.0
    %203 = vmatprep.subr.mxu0 0.0
    %204 = vmatpush1.xpose.msra.mxu0 0.0
    %205 = vmatprep.subr.mxu0 0.0
    %206 = vmatpush1.xpose.msra.mxu0 0.0
    %207 = vmatprep.subr.mxu0 0.0
    %208 = vmatpush1.xpose.msra.mxu0 0.0
    %209 = vmatprep.subr.mxu0 0.0
    %210 = vmatpush1.xpose.msra.mxu0 0.0
    %211 = vmatprep.subr.mxu0 0.0
    %212 = vmatpush1.xpose.msra.mxu0 0.0
    %213 = vmatprep.subr.mxu0 0.0
    %214 = vmatpush1.xpose.msra.mxu0 0.0
    %215 = vmatprep.subr.mxu0 0.0
    %216 = vmatpush1.xpose.msra.mxu0 0.0
    %217 = vmatprep.subr.mxu0 0.0
    %218 = vmatpush1.xpose.msra.mxu0 0.0
    %219 = vmatprep.subr.mxu0 0.0
    %220 = vmatpush1.xpose.msra.mxu0 0.0
    %221 = vmatprep.subr.mxu0 0.0
    %222 = vmatpush1.xpose.msra.mxu0 0.0
    %223 = vmatprep.subr.mxu0 0.0
    %224 = vmatpush1.xpose.msra.mxu0 0.0
    %225 = vmatprep.subr.mxu0 0.0
    %226 = vmatpush1.xpose.msra.mxu0 0.0
    %227 = vmatprep.subr.mxu0 0.0
    %228 = vmatpush1.xpose.msra.mxu0 0.0
    %229 = vmatprep.mubr.f32.mxu0 0.0
    %v230 = vand.u32 %v57, 4294901760
    %231 = vmatmul.mubr.f32.gmra.mrb[0].mxu0 %v230
    %v232 = vpop.f32.mrb[0].mxu0
    %v233 = vadd.f32 %v142, %v232
    %v234 = vpop.f32.mrb[0].mxu0
    %235 = vmatprep.mubr.f32.mxu0 0.0
    %v236 = vand.u32 %v60, 4294901760
    %237 = vmatmul.mubr.f32.gmra.mrb[0].mxu0 %v236
    %v238 = vpop.f32.mrb[0].mxu0
    %v239 = vadd.f32 %v152, %v238
    %v240 = vpop.f32.mrb[0].mxu0
    %241 = vdwg.mxu0
    %242 = vmatprep.subr.mxu0 0.0
    %v243 = vand.u32 %v63, 4294901760
    %v244 = vsub.f32 %v63, %v243
    %245 = vmatpush1.xpose.msra.mxu0 %v244
    %246 = vmatprep.subr.mxu0 0.0
    %v247 = vand.u32 %v66, 4294901760
    %v248 = vsub.f32 %v66, %v247
    %249 = vmatpush1.xpose.msra.mxu0 %v248
    %250 = vmatprep.subr.mxu0 0.0
    %251 = vmatpush1.xpose.msra.mxu0 0.0
    %252 = vmatprep.subr.mxu0 0.0
    %253 = vmatpush1.xpose.msra.mxu0 0.0
    %254 = vmatprep.subr.mxu0 0.0
    %255 = vmatpush1.xpose.msra.mxu0 0.0
    %256 = vmatprep.subr.mxu0 0.0
    %257 = vmatpush1.xpose.msra.mxu0 0.0
    %258 = vmatprep.subr.mxu0 0.0
    %259 = vmatpush1.xpose.msra.mxu0 0.0
    %260 = vmatprep.subr.mxu0 0.0
    %261 = vmatpush1.xpose.msra.mxu0 0.0
    %262 = vmatprep.subr.mxu0 0.0
    %263 = vmatpush1.xpose.msra.mxu0 0.0
    %264 = vmatprep.subr.mxu0 0.0
    %265 = vmatpush1.xpose.msra.mxu0 0.0
    %266 = vmatprep.subr.mxu0 0.0
    %267 = vmatpush1.xpose.msra.mxu0 0.0
    %268 = vmatprep.subr.mxu0 0.0
    %269 = vmatpush1.xpose.msra.mxu0 0.0
    %270 = vmatprep.subr.mxu0 0.0
    %271 = vmatpush1.xpose.msra.mxu0 0.0
    %272 = vmatprep.subr.mxu0 0.0
    %273 = vmatpush1.xpose.msra.mxu0 0.0
    %274 = vmatprep.subr.mxu0 0.0
    %275 = vmatpush1.xpose.msra.mxu0 0.0
    %276 = vmatprep.subr.mxu0 0.0
    %277 = vmatpush1.xpose.msra.mxu0 0.0
    %278 = vmatprep.subr.mxu0 0.0
    %279 = vmatpush1.xpose.msra.mxu0 0.0
    %280 = vmatprep.subr.mxu0 0.0
    %281 = vmatpush1.xpose.msra.mxu0 0.0
    %282 = vmatprep.subr.mxu0 0.0
    %283 = vmatpush1.xpose.msra.mxu0 0.0
    %284 = vmatprep.subr.mxu0 0.0
    %285 = vmatpush1.xpose.msra.mxu0 0.0
    %286 = vmatprep.subr.mxu0 0.0
    %287 = vmatpush1.xpose.msra.mxu0 0.0
    %288 = vmatprep.subr.mxu0 0.0
    %289 = vmatpush1.xpose.msra.mxu0 0.0
    %290 = vmatprep.subr.mxu0 0.0
    %291 = vmatpush1.xpose.msra.mxu0 0.0
    %292 = vmatprep.subr.mxu0 0.0
    %293 = vmatpush1.xpose.msra.mxu0 0.0
    %294 = vmatprep.subr.mxu0 0.0
    %295 = vmatpush1.xpose.msra.mxu0 0.0
    %296 = vmatprep.subr.mxu0 0.0
    %297 = vmatpush1.xpose.msra.mxu0 0.0
    %298 = vmatprep.subr.mxu0 0.0
    %299 = vmatpush1.xpose.msra.mxu0 0.0
    %300 = vmatprep.subr.mxu0 0.0
    %301 = vmatpush1.xpose.msra.mxu0 0.0
    %302 = vmatprep.subr.mxu0 0.0
    %303 = vmatpush1.xpose.msra.mxu0 0.0
    %304 = vmatprep.subr.mxu0 0.0
    %305 = vmatpush1.xpose.msra.mxu0 0.0
    %306 = vmatprep.subr.mxu0 0.0
    %307 = vmatpush1.xpose.msra.mxu0 0.0
    %308 = vmatprep.subr.mxu0 0.0
    %309 = vmatpush1.xpose.msra.mxu0 0.0
    %310 = vmatprep.mubr.f32.mxu0 0.0
    %v311 = vand.u32 %v57, 4294901760
    %v312 = vsub.f32 %v57, %v311
    %313 = vmatmul.mubr.f32.gmra.mrb[0].mxu0 %v312
    %v314 = vpop.f32.mrb[0].mxu0
    %v315 = vadd.f32 %v233, %v314
    %v316 = vpop.f32.mrb[0].mxu0
    %317 = vmatprep.mubr.f32.mxu0 0.0
    %v318 = vand.u32 %v60, 4294901760
    %v319 = vsub.f32 %v60, %v318
    %320 = vmatmul.mubr.f32.gmra.mrb[0].mxu0 %v319
    %v321 = vpop.f32.mrb[0].mxu0
    %v322 = vadd.f32 %v239, %v321
    %v323 = vpop.f32.mrb[0].mxu0
    %324 = vdwg.mxu0
    %325 = vmatprep.subr.mxu0 0.0
    %v326 = vand.u32 %v63, 4294901760
    %327 = vmatpush1.xpose.msra.mxu0 %v326
    %328 = vmatprep.subr.mxu0 0.0
    %v329 = vand.u32 %v66, 4294901760
    %330 = vmatpush1.xpose.msra.mxu0 %v329
    %331 = vmatprep.subr.mxu0 0.0
    %332 = vmatpush1.xpose.msra.mxu0 0.0
    %333 = vmatprep.subr.mxu0 0.0
    %334 = vmatpush1.xpose.msra.mxu0 0.0
    %335 = vmatprep.subr.mxu0 0.0
    %336 = vmatpush1.xpose.msra.mxu0 0.0
    %337 = vmatprep.subr.mxu0 0.0
    %338 = vmatpush1.xpose.msra.mxu0 0.0
    %339 = vmatprep.subr.mxu0 0.0
    %340 = vmatpush1.xpose.msra.mxu0 0.0
    %341 = vmatprep.subr.mxu0 0.0
    %342 = vmatpush1.xpose.msra.mxu0 0.0
    %343 = vmatprep.subr.mxu0 0.0
    %344 = vmatpush1.xpose.msra.mxu0 0.0
    %345 = vmatprep.subr.mxu0 0.0
    %346 = vmatpush1.xpose.msra.mxu0 0.0
    %347 = vmatprep.subr.mxu0 0.0
    %348 = vmatpush1.xpose.msra.mxu0 0.0
    %349 = vmatprep.subr.mxu0 0.0
    %350 = vmatpush1.xpose.msra.mxu0 0.0
    %351 = vmatprep.subr.mxu0 0.0
    %352 = vmatpush1.xpose.msra.mxu0 0.0
    %353 = vmatprep.subr.mxu0 0.0
    %354 = vmatpush1.xpose.msra.mxu0 0.0
    %355 = vmatprep.subr.mxu0 0.0
    %356 = vmatpush1.xpose.msra.mxu0 0.0
    %357 = vmatprep.subr.mxu0 0.0
    %358 = vmatpush1.xpose.msra.mxu0 0.0
    %359 = vmatprep.subr.mxu0 0.0
    %360 = vmatpush1.xpose.msra.mxu0 0.0
    %361 = vmatprep.subr.mxu0 0.0
    %362 = vmatpush1.xpose.msra.mxu0 0.0
    %363 = vmatprep.subr.mxu0 0.0
    %364 = vmatpush1.xpose.msra.mxu0 0.0
    %365 = vmatprep.subr.mxu0 0.0
    %366 = vmatpush1.xpose.msra.mxu0 0.0
    %367 = vmatprep.subr.mxu0 0.0
    %368 = vmatpush1.xpose.msra.mxu0 0.0
    %369 = vmatprep.subr.mxu0 0.0
    %370 = vmatpush1.xpose.msra.mxu0 0.0
    %371 = vmatprep.subr.mxu0 0.0
    %372 = vmatpush1.xpose.msra.mxu0 0.0
    %373 = vmatprep.subr.mxu0 0.0
    %374 = vmatpush1.xpose.msra.mxu0 0.0
    %375 = vmatprep.subr.mxu0 0.0
    %376 = vmatpush1.xpose.msra.mxu0 0.0
    %377 = vmatprep.subr.mxu0 0.0
    %378 = vmatpush1.xpose.msra.mxu0 0.0
    %379 = vmatprep.subr.mxu0 0.0
    %380 = vmatpush1.xpose.msra.mxu0 0.0
    %381 = vmatprep.subr.mxu0 0.0
    %382 = vmatpush1.xpose.msra.mxu0 0.0
    %383 = vmatprep.subr.mxu0 0.0
    %384 = vmatpush1.xpose.msra.mxu0 0.0
    %385 = vmatprep.subr.mxu0 0.0
    %386 = vmatpush1.xpose.msra.mxu0 0.0
    %387 = vmatprep.subr.mxu0 0.0
    %388 = vmatpush1.xpose.msra.mxu0 0.0
    %389 = vmatprep.subr.mxu0 0.0
    %390 = vmatpush1.xpose.msra.mxu0 0.0
    %391 = vmatprep.mubr.f32.mxu0 0.0
    %v392 = vand.u32 %v57, 4294901760
    %v393 = vsub.f32 %v57, %v392
    %v394 = vand.u32 %v393, 4294901760
    %395 = vmatmul.mubr.f32.gmra.mrb[0].mxu0 %v394
    %v396 = vpop.f32.mrb[0].mxu0
    %v397 = vadd.f32 %v315, %v396
    %v398 = vpop.f32.mrb[0].mxu0
    %399 = vmatprep.mubr.f32.mxu0 0.0
    %v400 = vand.u32 %v60, 4294901760
    %v401 = vsub.f32 %v60, %v400
    %v402 = vand.u32 %v401, 4294901760
    %403 = vmatmul.mubr.f32.gmra.mrb[0].mxu0 %v402
    %v404 = vpop.f32.mrb[0].mxu0
    %v405 = vadd.f32 %v322, %v404
    %v406 = vpop.f32.mrb[0].mxu0
    %407 = vdwg.mxu0
    %408 = vmatprep.subr.mxu0 0.0
    %v409 = vand.u32 %v63, 4294901760
    %v410 = vsub.f32 %v63, %v409
    %v411 = vand.u32 %v410, 4294901760
    %412 = vmatpush1.xpose.msra.mxu0 %v411
    %413 = vmatprep.subr.mxu0 0.0
    %v414 = vand.u32 %v66, 4294901760
    %v415 = vsub.f32 %v66, %v414
    %v416 = vand.u32 %v415, 4294901760
    %417 = vmatpush1.xpose.msra.mxu0 %v416
    %418 = vmatprep.subr.mxu0 0.0
    %419 = vmatpush1.xpose.msra.mxu0 0.0
    %420 = vmatprep.subr.mxu0 0.0
    %421 = vmatpush1.xpose.msra.mxu0 0.0
    %422 = vmatprep.subr.mxu0 0.0
    %423 = vmatpush1.xpose.msra.mxu0 0.0
    %424 = vmatprep.subr.mxu0 0.0
    %425 = vmatpush1.xpose.msra.mxu0 0.0
    %426 = vmatprep.subr.mxu0 0.0
    %427 = vmatpush1.xpose.msra.mxu0 0.0
    %428 = vmatprep.subr.mxu0 0.0
    %429 = vmatpush1.xpose.msra.mxu0 0.0
    %430 = vmatprep.subr.mxu0 0.0
    %431 = vmatpush1.xpose.msra.mxu0 0.0
    %432 = vmatprep.subr.mxu0 0.0
    %433 = vmatpush1.xpose.msra.mxu0 0.0
    %434 = vmatprep.subr.mxu0 0.0
    %435 = vmatpush1.xpose.msra.mxu0 0.0
    %436 = vmatprep.subr.mxu0 0.0
    %437 = vmatpush1.xpose.msra.mxu0 0.0
    %438 = vmatprep.subr.mxu0 0.0
    %439 = vmatpush1.xpose.msra.mxu0 0.0
    %440 = vmatprep.subr.mxu0 0.0
    %441 = vmatpush1.xpose.msra.mxu0 0.0
    %442 = vmatprep.subr.mxu0 0.0
    %443 = vmatpush1.xpose.msra.mxu0 0.0
    %444 = vmatprep.subr.mxu0 0.0
    %445 = vmatpush1.xpose.msra.mxu0 0.0
    %446 = vmatprep.subr.mxu0 0.0
    %447 = vmatpush1.xpose.msra.mxu0 0.0
    %448 = vmatprep.subr.mxu0 0.0
    %449 = vmatpush1.xpose.msra.mxu0 0.0
    %450 = vmatprep.subr.mxu0 0.0
    %451 = vmatpush1.xpose.msra.mxu0 0.0
    %452 = vmatprep.subr.mxu0 0.0
    %453 = vmatpush1.xpose.msra.mxu0 0.0
    %454 = vmatprep.subr.mxu0 0.0
    %455 = vmatpush1.xpose.msra.mxu0 0.0
    %456 = vmatprep.subr.mxu0 0.0
    %457 = vmatpush1.xpose.msra.mxu0 0.0
    %458 = vmatprep.subr.mxu0 0.0
    %459 = vmatpush1.xpose.msra.mxu0 0.0
    %460 = vmatprep.subr.mxu0 0.0
    %461 = vmatpush1.xpose.msra.mxu0 0.0
    %462 = vmatprep.subr.mxu0 0.0
    %463 = vmatpush1.xpose.msra.mxu0 0.0
    %464 = vmatprep.subr.mxu0 0.0
    %465 = vmatpush1.xpose.msra.mxu0 0.0
    %466 = vmatprep.subr.mxu0 0.0
    %467 = vmatpush1.xpose.msra.mxu0 0.0
    %468 = vmatprep.subr.mxu0 0.0
    %469 = vmatpush1.xpose.msra.mxu0 0.0
    %470 = vmatprep.subr.mxu0 0.0
    %471 = vmatpush1.xpose.msra.mxu0 0.0
    %472 = vmatprep.subr.mxu0 0.0
    %473 = vmatpush1.xpose.msra.mxu0 0.0
    %474 = vmatprep.subr.mxu0 0.0
    %475 = vmatpush1.xpose.msra.mxu0 0.0
    %476 = vmatprep.subr.mxu0 0.0
    %477 = vmatpush1.xpose.msra.mxu0 0.0
    %478 = vmatprep.mubr.f32.mxu0 0.0
    %v479 = vand.u32 %v57, 4294901760
    %480 = vmatmul.mubr.f32.gmra.mrb[0].mxu0 %v479
    %v481 = vpop.f32.mrb[0].mxu0
    %v482 = vadd.f32 %v397, %v481
    %v483 = vpop.f32.mrb[0].mxu0
    %484 = vmatprep.mubr.f32.mxu0 0.0
    %v485 = vand.u32 %v60, 4294901760
    %486 = vmatmul.mubr.f32.gmra.mrb[0].mxu0 %v485
    %v487 = vpop.f32.mrb[0].mxu0
    %v488 = vadd.f32 %v405, %v487
    %v489 = vpop.f32.mrb[0].mxu0
    %490 = vdwg.mxu0
    %491 = vmatprep.subr.mxu0 0.0
    %v492 = vand.u32 %v63, 4294901760
    %493 = vmatpush1.xpose.msra.mxu0 %v492
    %494 = vmatprep.subr.mxu0 0.0
    %v495 = vand.u32 %v66, 4294901760
    %496 = vmatpush1.xpose.msra.mxu0 %v495
    %497 = vmatprep.subr.mxu0 0.0
    %498 = vmatpush1.xpose.msra.mxu0 0.0
    %499 = vmatprep.subr.mxu0 0.0
    %500 = vmatpush1.xpose.msra.mxu0 0.0
    %501 = vmatprep.subr.mxu0 0.0
    %502 = vmatpush1.xpose.msra.mxu0 0.0
    %503 = vmatprep.subr.mxu0 0.0
    %504 = vmatpush1.xpose.msra.mxu0 0.0
    %505 = vmatprep.subr.mxu0 0.0
    %506 = vmatpush1.xpose.msra.mxu0 0.0
    %507 = vmatprep.subr.mxu0 0.0
    %508 = vmatpush1.xpose.msra.mxu0 0.0
    %509 = vmatprep.subr.mxu0 0.0
    %510 = vmatpush1.xpose.msra.mxu0 0.0
    %511 = vmatprep.subr.mxu0 0.0
    %512 = vmatpush1.xpose.msra.mxu0 0.0
    %513 = vmatprep.subr.mxu0 0.0
    %514 = vmatpush1.xpose.msra.mxu0 0.0
    %515 = vmatprep.subr.mxu0 0.0
    %516 = vmatpush1.xpose.msra.mxu0 0.0
    %517 = vmatprep.subr.mxu0 0.0
    %518 = vmatpush1.xpose.msra.mxu0 0.0
    %519 = vmatprep.subr.mxu0 0.0
    %520 = vmatpush1.xpose.msra.mxu0 0.0
    %521 = vmatprep.subr.mxu0 0.0
    %522 = vmatpush1.xpose.msra.mxu0 0.0
    %523 = vmatprep.subr.mxu0 0.0
    %524 = vmatpush1.xpose.msra.mxu0 0.0
    %525 = vmatprep.subr.mxu0 0.0
    %526 = vmatpush1.xpose.msra.mxu0 0.0
    %527 = vmatprep.subr.mxu0 0.0
    %528 = vmatpush1.xpose.msra.mxu0 0.0
    %529 = vmatprep.subr.mxu0 0.0
    %530 = vmatpush1.xpose.msra.mxu0 0.0
    %531 = vmatprep.subr.mxu0 0.0
    %532 = vmatpush1.xpose.msra.mxu0 0.0
    %533 = vmatprep.subr.mxu0 0.0
    %534 = vmatpush1.xpose.msra.mxu0 0.0
    %535 = vmatprep.subr.mxu0 0.0
    %536 = vmatpush1.xpose.msra.mxu0 0.0
    %537 = vmatprep.subr.mxu0 0.0
    %538 = vmatpush1.xpose.msra.mxu0 0.0
    %539 = vmatprep.subr.mxu0 0.0
    %540 = vmatpush1.xpose.msra.mxu0 0.0
    %541 = vmatprep.subr.mxu0 0.0
    %542 = vmatpush1.xpose.msra.mxu0 0.0
    %543 = vmatprep.subr.mxu0 0.0
    %544 = vmatpush1.xpose.msra.mxu0 0.0
    %545 = vmatprep.subr.mxu0 0.0
    %546 = vmatpush1.xpose.msra.mxu0 0.0
    %547 = vmatprep.subr.mxu0 0.0
    %548 = vmatpush1.xpose.msra.mxu0 0.0
    %549 = vmatprep.subr.mxu0 0.0
    %550 = vmatpush1.xpose.msra.mxu0 0.0
    %551 = vmatprep.subr.mxu0 0.0
    %552 = vmatpush1.xpose.msra.mxu0 0.0
    %553 = vmatprep.subr.mxu0 0.0
    %554 = vmatpush1.xpose.msra.mxu0 0.0
    %555 = vmatprep.subr.mxu0 0.0
    %556 = vmatpush1.xpose.msra.mxu0 0.0
    %557 = vmatprep.mubr.f32.mxu0 0.0
    %v558 = vand.u32 %v57, 4294901760
    %559 = vmatmul.mubr.f32.gmra.mrb[0].mxu0 %v558
    %v560 = vpop.f32.mrb[0].mxu0
    %v561 = vadd.f32 %v482, %v560
    %v562 = vpop.f32.mrb[0].mxu0
    %563 = vmatprep.mubr.f32.mxu0 0.0
    %v564 = vand.u32 %v60, 4294901760
    %565 = vmatmul.mubr.f32.gmra.mrb[0].mxu0 %v564
    %v566 = vpop.f32.mrb[0].mxu0
    %v567 = vadd.f32 %v488, %v566
    %v568 = vpop.f32.mrb[0].mxu0
    %569 = vdwg.mxu0
    %v570 = vmul.f32 %v45, %v51
    %v571 = vmul.f32 %v46, %v51
    %v573 = vsel %vm55, %v570, 0
    %v576 = vsel %vm55, %v571, 0
    %v579 = vsel %vm55, %v35, 0
    %v582 = vsel %vm55, %v36, 0
    %584 = vmatprep.subr.mxu0 0.0
    %v585 = vand.u32 %v579, 4294901760
    %586 = vmatpush1.xpose.msra.mxu0 %v585
    %587 = vmatprep.subr.mxu0 0.0
    %v588 = vand.u32 %v582, 4294901760
    %589 = vmatpush1.xpose.msra.mxu0 %v588
    %590 = vmatprep.subr.mxu0 0.0
    %591 = vmatpush1.xpose.msra.mxu0 0.0
    %592 = vmatprep.subr.mxu0 0.0
    %593 = vmatpush1.xpose.msra.mxu0 0.0
    %594 = vmatprep.subr.mxu0 0.0
    %595 = vmatpush1.xpose.msra.mxu0 0.0
    %596 = vmatprep.subr.mxu0 0.0
    %597 = vmatpush1.xpose.msra.mxu0 0.0
    %598 = vmatprep.subr.mxu0 0.0
    %599 = vmatpush1.xpose.msra.mxu0 0.0
    %600 = vmatprep.subr.mxu0 0.0
    %601 = vmatpush1.xpose.msra.mxu0 0.0
    %602 = vmatprep.subr.mxu0 0.0
    %603 = vmatpush1.xpose.msra.mxu0 0.0
    %604 = vmatprep.subr.mxu0 0.0
    %605 = vmatpush1.xpose.msra.mxu0 0.0
    %606 = vmatprep.subr.mxu0 0.0
    %607 = vmatpush1.xpose.msra.mxu0 0.0
    %608 = vmatprep.subr.mxu0 0.0
    %609 = vmatpush1.xpose.msra.mxu0 0.0
    %610 = vmatprep.subr.mxu0 0.0
    %611 = vmatpush1.xpose.msra.mxu0 0.0
    %612 = vmatprep.subr.mxu0 0.0
    %613 = vmatpush1.xpose.msra.mxu0 0.0
    %614 = vmatprep.subr.mxu0 0.0
    %615 = vmatpush1.xpose.msra.mxu0 0.0
    %616 = vmatprep.subr.mxu0 0.0
    %617 = vmatpush1.xpose.msra.mxu0 0.0
    %618 = vmatprep.subr.mxu0 0.0
    %619 = vmatpush1.xpose.msra.mxu0 0.0
    %620 = vmatprep.subr.mxu0 0.0
    %621 = vmatpush1.xpose.msra.mxu0 0.0
    %622 = vmatprep.subr.mxu0 0.0
    %623 = vmatpush1.xpose.msra.mxu0 0.0
    %624 = vmatprep.subr.mxu0 0.0
    %625 = vmatpush1.xpose.msra.mxu0 0.0
    %626 = vmatprep.subr.mxu0 0.0
    %627 = vmatpush1.xpose.msra.mxu0 0.0
    %628 = vmatprep.subr.mxu0 0.0
    %629 = vmatpush1.xpose.msra.mxu0 0.0
    %630 = vmatprep.subr.mxu0 0.0
    %631 = vmatpush1.xpose.msra.mxu0 0.0
    %632 = vmatprep.subr.mxu0 0.0
    %633 = vmatpush1.xpose.msra.mxu0 0.0
    %634 = vmatprep.subr.mxu0 0.0
    %635 = vmatpush1.xpose.msra.mxu0 0.0
    %636 = vmatprep.subr.mxu0 0.0
    %637 = vmatpush1.xpose.msra.mxu0 0.0
    %638 = vmatprep.subr.mxu0 0.0
    %639 = vmatpush1.xpose.msra.mxu0 0.0
    %640 = vmatprep.subr.mxu0 0.0
    %641 = vmatpush1.xpose.msra.mxu0 0.0
    %642 = vmatprep.subr.mxu0 0.0
    %643 = vmatpush1.xpose.msra.mxu0 0.0
    %644 = vmatprep.subr.mxu0 0.0
    %645 = vmatpush1.xpose.msra.mxu0 0.0
    %646 = vmatprep.subr.mxu0 0.0
    %647 = vmatpush1.xpose.msra.mxu0 0.0
    %648 = vmatprep.subr.mxu0 0.0
    %649 = vmatpush1.xpose.msra.mxu0 0.0
    %650 = vmatprep.mubr.f32.mxu0 0.0
    %v651 = vand.u32 %v573, 4294901760
    %v652 = vsub.f32 %v573, %v651
    %v653 = vand.u32 %v652, 4294901760
    %v654 = vsub.f32 %v652, %v653
    %v655 = vand.u32 %v654, 4294901760
    %656 = vmatmul.mubr.f32.gmra.mrb[0].mxu0 %v655
    %v657 = vpop.f32.mrb[0].mxu0
    %v658 = vadd.f32 0.0, %v657
    %v659 = vpop.f32.mrb[0].mxu0
    %660 = vmatprep.mubr.f32.mxu0 0.0
    %v661 = vand.u32 %v576, 4294901760
    %v662 = vsub.f32 %v576, %v661
    %v663 = vand.u32 %v662, 4294901760
    %v664 = vsub.f32 %v662, %v663
    %v665 = vand.u32 %v664, 4294901760
    %666 = vmatmul.mubr.f32.gmra.mrb[0].mxu0 %v665
    %v667 = vpop.f32.mrb[0].mxu0
    %v668 = vadd.f32 0.0, %v667
    %v669 = vpop.f32.mrb[0].mxu0
    %670 = vdwg.mxu0
    %671 = vmatprep.subr.mxu0 0.0
    %v672 = vand.u32 %v579, 4294901760
    %v673 = vsub.f32 %v579, %v672
    %v674 = vand.u32 %v673, 4294901760
    %v675 = vsub.f32 %v673, %v674
    %v676 = vand.u32 %v675, 4294901760
    %677 = vmatpush1.xpose.msra.mxu0 %v676
    %678 = vmatprep.subr.mxu0 0.0
    %v679 = vand.u32 %v582, 4294901760
    %v680 = vsub.f32 %v582, %v679
    %v681 = vand.u32 %v680, 4294901760
    %v682 = vsub.f32 %v680, %v681
    %v683 = vand.u32 %v682, 4294901760
    %684 = vmatpush1.xpose.msra.mxu0 %v683
    %685 = vmatprep.subr.mxu0 0.0
    %686 = vmatpush1.xpose.msra.mxu0 0.0
    %687 = vmatprep.subr.mxu0 0.0
    %688 = vmatpush1.xpose.msra.mxu0 0.0
    %689 = vmatprep.subr.mxu0 0.0
    %690 = vmatpush1.xpose.msra.mxu0 0.0
    %691 = vmatprep.subr.mxu0 0.0
    %692 = vmatpush1.xpose.msra.mxu0 0.0
    %693 = vmatprep.subr.mxu0 0.0
    %694 = vmatpush1.xpose.msra.mxu0 0.0
    %695 = vmatprep.subr.mxu0 0.0
    %696 = vmatpush1.xpose.msra.mxu0 0.0
    %697 = vmatprep.subr.mxu0 0.0
    %698 = vmatpush1.xpose.msra.mxu0 0.0
    %699 = vmatprep.subr.mxu0 0.0
    %700 = vmatpush1.xpose.msra.mxu0 0.0
    %701 = vmatprep.subr.mxu0 0.0
    %702 = vmatpush1.xpose.msra.mxu0 0.0
    %703 = vmatprep.subr.mxu0 0.0
    %704 = vmatpush1.xpose.msra.mxu0 0.0
    %705 = vmatprep.subr.mxu0 0.0
    %706 = vmatpush1.xpose.msra.mxu0 0.0
    %707 = vmatprep.subr.mxu0 0.0
    %708 = vmatpush1.xpose.msra.mxu0 0.0
    %709 = vmatprep.subr.mxu0 0.0
    %710 = vmatpush1.xpose.msra.mxu0 0.0
    %711 = vmatprep.subr.mxu0 0.0
    %712 = vmatpush1.xpose.msra.mxu0 0.0
    %713 = vmatprep.subr.mxu0 0.0
    %714 = vmatpush1.xpose.msra.mxu0 0.0
    %715 = vmatprep.subr.mxu0 0.0
    %716 = vmatpush1.xpose.msra.mxu0 0.0
    %717 = vmatprep.subr.mxu0 0.0
    %718 = vmatpush1.xpose.msra.mxu0 0.0
    %719 = vmatprep.subr.mxu0 0.0
    %720 = vmatpush1.xpose.msra.mxu0 0.0
    %721 = vmatprep.subr.mxu0 0.0
    %722 = vmatpush1.xpose.msra.mxu0 0.0
    %723 = vmatprep.subr.mxu0 0.0
    %724 = vmatpush1.xpose.msra.mxu0 0.0
    %725 = vmatprep.subr.mxu0 0.0
    %726 = vmatpush1.xpose.msra.mxu0 0.0
    %727 = vmatprep.subr.mxu0 0.0
    %728 = vmatpush1.xpose.msra.mxu0 0.0
    %729 = vmatprep.subr.mxu0 0.0
    %730 = vmatpush1.xpose.msra.mxu0 0.0
    %731 = vmatprep.subr.mxu0 0.0
    %732 = vmatpush1.xpose.msra.mxu0 0.0
    %733 = vmatprep.subr.mxu0 0.0
    %734 = vmatpush1.xpose.msra.mxu0 0.0
    %735 = vmatprep.subr.mxu0 0.0
    %736 = vmatpush1.xpose.msra.mxu0 0.0
    %737 = vmatprep.subr.mxu0 0.0
    %738 = vmatpush1.xpose.msra.mxu0 0.0
    %739 = vmatprep.subr.mxu0 0.0
    %740 = vmatpush1.xpose.msra.mxu0 0.0
    %741 = vmatprep.subr.mxu0 0.0
    %742 = vmatpush1.xpose.msra.mxu0 0.0
    %743 = vmatprep.subr.mxu0 0.0
    %744 = vmatpush1.xpose.msra.mxu0 0.0
    %745 = vmatprep.mubr.f32.mxu0 0.0
    %v746 = vand.u32 %v573, 4294901760
    %747 = vmatmul.mubr.f32.gmra.mrb[0].mxu0 %v746
    %v748 = vpop.f32.mrb[0].mxu0
    %v749 = vadd.f32 %v658, %v748
    %v750 = vpop.f32.mrb[0].mxu0
    %751 = vmatprep.mubr.f32.mxu0 0.0
    %v752 = vand.u32 %v576, 4294901760
    %753 = vmatmul.mubr.f32.gmra.mrb[0].mxu0 %v752
    %v754 = vpop.f32.mrb[0].mxu0
    %v755 = vadd.f32 %v668, %v754
    %v756 = vpop.f32.mrb[0].mxu0
    %757 = vdwg.mxu0
    %758 = vmatprep.subr.mxu0 0.0
    %v759 = vand.u32 %v579, 4294901760
    %v760 = vsub.f32 %v579, %v759
    %761 = vmatpush1.xpose.msra.mxu0 %v760
    %762 = vmatprep.subr.mxu0 0.0
    %v763 = vand.u32 %v582, 4294901760
    %v764 = vsub.f32 %v582, %v763
    %765 = vmatpush1.xpose.msra.mxu0 %v764
    %766 = vmatprep.subr.mxu0 0.0
    %767 = vmatpush1.xpose.msra.mxu0 0.0
    %768 = vmatprep.subr.mxu0 0.0
    %769 = vmatpush1.xpose.msra.mxu0 0.0
    %770 = vmatprep.subr.mxu0 0.0
    %771 = vmatpush1.xpose.msra.mxu0 0.0
    %772 = vmatprep.subr.mxu0 0.0
    %773 = vmatpush1.xpose.msra.mxu0 0.0
    %774 = vmatprep.subr.mxu0 0.0
    %775 = vmatpush1.xpose.msra.mxu0 0.0
    %776 = vmatprep.subr.mxu0 0.0
    %777 = vmatpush1.xpose.msra.mxu0 0.0
    %778 = vmatprep.subr.mxu0 0.0
    %779 = vmatpush1.xpose.msra.mxu0 0.0
    %780 = vmatprep.subr.mxu0 0.0
    %781 = vmatpush1.xpose.msra.mxu0 0.0
    %782 = vmatprep.subr.mxu0 0.0
    %783 = vmatpush1.xpose.msra.mxu0 0.0
    %784 = vmatprep.subr.mxu0 0.0
    %785 = vmatpush1.xpose.msra.mxu0 0.0
    %786 = vmatprep.subr.mxu0 0.0
    %787 = vmatpush1.xpose.msra.mxu0 0.0
    %788 = vmatprep.subr.mxu0 0.0
    %789 = vmatpush1.xpose.msra.mxu0 0.0
    %790 = vmatprep.subr.mxu0 0.0
    %791 = vmatpush1.xpose.msra.mxu0 0.0
    %792 = vmatprep.subr.mxu0 0.0
    %793 = vmatpush1.xpose.msra.mxu0 0.0
    %794 = vmatprep.subr.mxu0 0.0
    %795 = vmatpush1.xpose.msra.mxu0 0.0
    %796 = vmatprep.subr.mxu0 0.0
    %797 = vmatpush1.xpose.msra.mxu0 0.0
    %798 = vmatprep.subr.mxu0 0.0
    %799 = vmatpush1.xpose.msra.mxu0 0.0
    %800 = vmatprep.subr.mxu0 0.0
    %801 = vmatpush1.xpose.msra.mxu0 0.0
    %802 = vmatprep.subr.mxu0 0.0
    %803 = vmatpush1.xpose.msra.mxu0 0.0
    %804 = vmatprep.subr.mxu0 0.0
    %805 = vmatpush1.xpose.msra.mxu0 0.0
    %806 = vmatprep.subr.mxu0 0.0
    %807 = vmatpush1.xpose.msra.mxu0 0.0
    %808 = vmatprep.subr.mxu0 0.0
    %809 = vmatpush1.xpose.msra.mxu0 0.0
    %810 = vmatprep.subr.mxu0 0.0
    %811 = vmatpush1.xpose.msra.mxu0 0.0
    %812 = vmatprep.subr.mxu0 0.0
    %813 = vmatpush1.xpose.msra.mxu0 0.0
    %814 = vmatprep.subr.mxu0 0.0
    %815 = vmatpush1.xpose.msra.mxu0 0.0
    %816 = vmatprep.subr.mxu0 0.0
    %817 = vmatpush1.xpose.msra.mxu0 0.0
    %818 = vmatprep.subr.mxu0 0.0
    %819 = vmatpush1.xpose.msra.mxu0 0.0
    %820 = vmatprep.subr.mxu0 0.0
    %821 = vmatpush1.xpose.msra.mxu0 0.0
    %822 = vmatprep.subr.mxu0 0.0
    %823 = vmatpush1.xpose.msra.mxu0 0.0
    %824 = vmatprep.subr.mxu0 0.0
    %825 = vmatpush1.xpose.msra.mxu0 0.0
    %826 = vmatprep.mubr.f32.mxu0 0.0
    %v827 = vand.u32 %v573, 4294901760
    %v828 = vsub.f32 %v573, %v827
    %829 = vmatmul.mubr.f32.gmra.mrb[0].mxu0 %v828
    %v830 = vpop.f32.mrb[0].mxu0
    %v831 = vadd.f32 %v749, %v830
    %v832 = vpop.f32.mrb[0].mxu0
    %833 = vmatprep.mubr.f32.mxu0 0.0
    %v834 = vand.u32 %v576, 4294901760
    %v835 = vsub.f32 %v576, %v834
    %836 = vmatmul.mubr.f32.gmra.mrb[0].mxu0 %v835
    %v837 = vpop.f32.mrb[0].mxu0
    %v838 = vadd.f32 %v755, %v837
    %v839 = vpop.f32.mrb[0].mxu0
    %840 = vdwg.mxu0
    %841 = vmatprep.subr.mxu0 0.0
    %v842 = vand.u32 %v579, 4294901760
    %843 = vmatpush1.xpose.msra.mxu0 %v842
    %844 = vmatprep.subr.mxu0 0.0
    %v845 = vand.u32 %v582, 4294901760
    %846 = vmatpush1.xpose.msra.mxu0 %v845
    %847 = vmatprep.subr.mxu0 0.0
    %848 = vmatpush1.xpose.msra.mxu0 0.0
    %849 = vmatprep.subr.mxu0 0.0
    %850 = vmatpush1.xpose.msra.mxu0 0.0
    %851 = vmatprep.subr.mxu0 0.0
    %852 = vmatpush1.xpose.msra.mxu0 0.0
    %853 = vmatprep.subr.mxu0 0.0
    %854 = vmatpush1.xpose.msra.mxu0 0.0
    %855 = vmatprep.subr.mxu0 0.0
    %856 = vmatpush1.xpose.msra.mxu0 0.0
    %857 = vmatprep.subr.mxu0 0.0
    %858 = vmatpush1.xpose.msra.mxu0 0.0
    %859 = vmatprep.subr.mxu0 0.0
    %860 = vmatpush1.xpose.msra.mxu0 0.0
    %861 = vmatprep.subr.mxu0 0.0
    %862 = vmatpush1.xpose.msra.mxu0 0.0
    %863 = vmatprep.subr.mxu0 0.0
    %864 = vmatpush1.xpose.msra.mxu0 0.0
    %865 = vmatprep.subr.mxu0 0.0
    %866 = vmatpush1.xpose.msra.mxu0 0.0
    %867 = vmatprep.subr.mxu0 0.0
    %868 = vmatpush1.xpose.msra.mxu0 0.0
    %869 = vmatprep.subr.mxu0 0.0
    %870 = vmatpush1.xpose.msra.mxu0 0.0
    %871 = vmatprep.subr.mxu0 0.0
    %872 = vmatpush1.xpose.msra.mxu0 0.0
    %873 = vmatprep.subr.mxu0 0.0
    %874 = vmatpush1.xpose.msra.mxu0 0.0
    %875 = vmatprep.subr.mxu0 0.0
    %876 = vmatpush1.xpose.msra.mxu0 0.0
    %877 = vmatprep.subr.mxu0 0.0
    %878 = vmatpush1.xpose.msra.mxu0 0.0
    %879 = vmatprep.subr.mxu0 0.0
    %880 = vmatpush1.xpose.msra.mxu0 0.0
    %881 = vmatprep.subr.mxu0 0.0
    %882 = vmatpush1.xpose.msra.mxu0 0.0
    %883 = vmatprep.subr.mxu0 0.0
    %884 = vmatpush1.xpose.msra.mxu0 0.0
    %885 = vmatprep.subr.mxu0 0.0
    %886 = vmatpush1.xpose.msra.mxu0 0.0
    %887 = vmatprep.subr.mxu0 0.0
    %888 = vmatpush1.xpose.msra.mxu0 0.0
    %889 = vmatprep.subr.mxu0 0.0
    %890 = vmatpush1.xpose.msra.mxu0 0.0
    %891 = vmatprep.subr.mxu0 0.0
    %892 = vmatpush1.xpose.msra.mxu0 0.0
    %893 = vmatprep.subr.mxu0 0.0
    %894 = vmatpush1.xpose.msra.mxu0 0.0
    %895 = vmatprep.subr.mxu0 0.0
    %896 = vmatpush1.xpose.msra.mxu0 0.0
    %897 = vmatprep.subr.mxu0 0.0
    %898 = vmatpush1.xpose.msra.mxu0 0.0
    %899 = vmatprep.subr.mxu0 0.0
    %900 = vmatpush1.xpose.msra.mxu0 0.0
    %901 = vmatprep.subr.mxu0 0.0
    %902 = vmatpush1.xpose.msra.mxu0 0.0
    %903 = vmatprep.subr.mxu0 0.0
    %904 = vmatpush1.xpose.msra.mxu0 0.0
    %905 = vmatprep.subr.mxu0 0.0
    %906 = vmatpush1.xpose.msra.mxu0 0.0
    %907 = vmatprep.mubr.f32.mxu0 0.0
    %v908 = vand.u32 %v573, 4294901760
    %v909 = vsub.f32 %v573, %v908
    %v910 = vand.u32 %v909, 4294901760
    %911 = vmatmul.mubr.f32.gmra.mrb[0].mxu0 %v910
    %v912 = vpop.f32.mrb[0].mxu0
    %v913 = vadd.f32 %v831, %v912
    %v914 = vpop.f32.mrb[0].mxu0
    %915 = vmatprep.mubr.f32.mxu0 0.0
    %v916 = vand.u32 %v576, 4294901760
    %v917 = vsub.f32 %v576, %v916
    %v918 = vand.u32 %v917, 4294901760
    %919 = vmatmul.mubr.f32.gmra.mrb[0].mxu0 %v918
    %v920 = vpop.f32.mrb[0].mxu0
    %v921 = vadd.f32 %v838, %v920
    %v922 = vpop.f32.mrb[0].mxu0
    %923 = vdwg.mxu0
    %924 = vmatprep.subr.mxu0 0.0
    %v925 = vand.u32 %v579, 4294901760
    %v926 = vsub.f32 %v579, %v925
    %v927 = vand.u32 %v926, 4294901760
    %928 = vmatpush1.xpose.msra.mxu0 %v927
    %929 = vmatprep.subr.mxu0 0.0
    %v930 = vand.u32 %v582, 4294901760
    %v931 = vsub.f32 %v582, %v930
    %v932 = vand.u32 %v931, 4294901760
    %933 = vmatpush1.xpose.msra.mxu0 %v932
    %934 = vmatprep.subr.mxu0 0.0
    %935 = vmatpush1.xpose.msra.mxu0 0.0
    %936 = vmatprep.subr.mxu0 0.0
    %937 = vmatpush1.xpose.msra.mxu0 0.0
    %938 = vmatprep.subr.mxu0 0.0
    %939 = vmatpush1.xpose.msra.mxu0 0.0
    %940 = vmatprep.subr.mxu0 0.0
    %941 = vmatpush1.xpose.msra.mxu0 0.0
    %942 = vmatprep.subr.mxu0 0.0
    %943 = vmatpush1.xpose.msra.mxu0 0.0
    %944 = vmatprep.subr.mxu0 0.0
    %945 = vmatpush1.xpose.msra.mxu0 0.0
    %946 = vmatprep.subr.mxu0 0.0
    %947 = vmatpush1.xpose.msra.mxu0 0.0
    %948 = vmatprep.subr.mxu0 0.0
    %949 = vmatpush1.xpose.msra.mxu0 0.0
    %950 = vmatprep.subr.mxu0 0.0
    %951 = vmatpush1.xpose.msra.mxu0 0.0
    %952 = vmatprep.subr.mxu0 0.0
    %953 = vmatpush1.xpose.msra.mxu0 0.0
    %954 = vmatprep.subr.mxu0 0.0
    %955 = vmatpush1.xpose.msra.mxu0 0.0
    %956 = vmatprep.subr.mxu0 0.0
    %957 = vmatpush1.xpose.msra.mxu0 0.0
    %958 = vmatprep.subr.mxu0 0.0
    %959 = vmatpush1.xpose.msra.mxu0 0.0
    %960 = vmatprep.subr.mxu0 0.0
    %961 = vmatpush1.xpose.msra.mxu0 0.0
    %962 = vmatprep.subr.mxu0 0.0
    %963 = vmatpush1.xpose.msra.mxu0 0.0
    %964 = vmatprep.subr.mxu0 0.0
    %965 = vmatpush1.xpose.msra.mxu0 0.0
    %966 = vmatprep.subr.mxu0 0.0
    %967 = vmatpush1.xpose.msra.mxu0 0.0
    %968 = vmatprep.subr.mxu0 0.0
    %969 = vmatpush1.xpose.msra.mxu0 0.0
    %970 = vmatprep.subr.mxu0 0.0
    %971 = vmatpush1.xpose.msra.mxu0 0.0
    %972 = vmatprep.subr.mxu0 0.0
    %973 = vmatpush1.xpose.msra.mxu0 0.0
    %974 = vmatprep.subr.mxu0 0.0
    %975 = vmatpush1.xpose.msra.mxu0 0.0
    %976 = vmatprep.subr.mxu0 0.0
    %977 = vmatpush1.xpose.msra.mxu0 0.0
    %978 = vmatprep.subr.mxu0 0.0
    %979 = vmatpush1.xpose.msra.mxu0 0.0
    %980 = vmatprep.subr.mxu0 0.0
    %981 = vmatpush1.xpose.msra.mxu0 0.0
    %982 = vmatprep.subr.mxu0 0.0
    %983 = vmatpush1.xpose.msra.mxu0 0.0
    %984 = vmatprep.subr.mxu0 0.0
    %985 = vmatpush1.xpose.msra.mxu0 0.0
    %986 = vmatprep.subr.mxu0 0.0
    %987 = vmatpush1.xpose.msra.mxu0 0.0
    %988 = vmatprep.subr.mxu0 0.0
    %989 = vmatpush1.xpose.msra.mxu0 0.0
    %990 = vmatprep.subr.mxu0 0.0
    %991 = vmatpush1.xpose.msra.mxu0 0.0
    %992 = vmatprep.subr.mxu0 0.0
    %993 = vmatpush1.xpose.msra.mxu0 0.0
    %994 = vmatprep.mubr.f32.mxu0 0.0
    %v995 = vand.u32 %v573, 4294901760
    %996 = vmatmul.mubr.f32.gmra.mrb[0].mxu0 %v995
    %v997 = vpop.f32.mrb[0].mxu0
    %v998 = vadd.f32 %v913, %v997
    %v999 = vpop.f32.mrb[0].mxu0
    %1000 = vmatprep.mubr.f32.mxu0 0.0
    %v1001 = vand.u32 %v576, 4294901760
    %1002 = vmatmul.mubr.f32.gmra.mrb[0].mxu0 %v1001
    %v1003 = vpop.f32.mrb[0].mxu0
    %v1004 = vadd.f32 %v921, %v1003
    %v1005 = vpop.f32.mrb[0].mxu0
    %1006 = vdwg.mxu0
    %1007 = vmatprep.subr.mxu0 0.0
    %v1008 = vand.u32 %v579, 4294901760
    %1009 = vmatpush1.xpose.msra.mxu0 %v1008
    %1010 = vmatprep.subr.mxu0 0.0
    %v1011 = vand.u32 %v582, 4294901760
    %1012 = vmatpush1.xpose.msra.mxu0 %v1011
    %1013 = vmatprep.subr.mxu0 0.0
    %1014 = vmatpush1.xpose.msra.mxu0 0.0
    %1015 = vmatprep.subr.mxu0 0.0
    %1016 = vmatpush1.xpose.msra.mxu0 0.0
    %1017 = vmatprep.subr.mxu0 0.0
    %1018 = vmatpush1.xpose.msra.mxu0 0.0
    %1019 = vmatprep.subr.mxu0 0.0
    %1020 = vmatpush1.xpose.msra.mxu0 0.0
    %1021 = vmatprep.subr.mxu0 0.0
    %1022 = vmatpush1.xpose.msra.mxu0 0.0
    %1023 = vmatprep.subr.mxu0 0.0
    %1024 = vmatpush1.xpose.msra.mxu0 0.0
    %1025 = vmatprep.subr.mxu0 0.0
    %1026 = vmatpush1.xpose.msra.mxu0 0.0
    %1027 = vmatprep.subr.mxu0 0.0
    %1028 = vmatpush1.xpose.msra.mxu0 0.0
    %1029 = vmatprep.subr.mxu0 0.0
    %1030 = vmatpush1.xpose.msra.mxu0 0.0
    %1031 = vmatprep.subr.mxu0 0.0
    %1032 = vmatpush1.xpose.msra.mxu0 0.0
    %1033 = vmatprep.subr.mxu0 0.0
    %1034 = vmatpush1.xpose.msra.mxu0 0.0
    %1035 = vmatprep.subr.mxu0 0.0
    %1036 = vmatpush1.xpose.msra.mxu0 0.0
    %1037 = vmatprep.subr.mxu0 0.0
    %1038 = vmatpush1.xpose.msra.mxu0 0.0
    %1039 = vmatprep.subr.mxu0 0.0
    %1040 = vmatpush1.xpose.msra.mxu0 0.0
    %1041 = vmatprep.subr.mxu0 0.0
    %1042 = vmatpush1.xpose.msra.mxu0 0.0
    %1043 = vmatprep.subr.mxu0 0.0
    %1044 = vmatpush1.xpose.msra.mxu0 0.0
    %1045 = vmatprep.subr.mxu0 0.0
    %1046 = vmatpush1.xpose.msra.mxu0 0.0
    %1047 = vmatprep.subr.mxu0 0.0
    %1048 = vmatpush1.xpose.msra.mxu0 0.0
    %1049 = vmatprep.subr.mxu0 0.0
    %1050 = vmatpush1.xpose.msra.mxu0 0.0
    %1051 = vmatprep.subr.mxu0 0.0
    %1052 = vmatpush1.xpose.msra.mxu0 0.0
    %1053 = vmatprep.subr.mxu0 0.0
    %1054 = vmatpush1.xpose.msra.mxu0 0.0
    %1055 = vmatprep.subr.mxu0 0.0
    %1056 = vmatpush1.xpose.msra.mxu0 0.0
    %1057 = vmatprep.subr.mxu0 0.0
    %1058 = vmatpush1.xpose.msra.mxu0 0.0
    %1059 = vmatprep.subr.mxu0 0.0
    %1060 = vmatpush1.xpose.msra.mxu0 0.0
    %1061 = vmatprep.subr.mxu0 0.0
    %1062 = vmatpush1.xpose.msra.mxu0 0.0
    %1063 = vmatprep.subr.mxu0 0.0
    %1064 = vmatpush1.xpose.msra.mxu0 0.0
    %1065 = vmatprep.subr.mxu0 0.0
    %1066 = vmatpush1.xpose.msra.mxu0 0.0
    %1067 = vmatprep.subr.mxu0 0.0
    %1068 = vmatpush1.xpose.msra.mxu0 0.0
    %1069 = vmatprep.subr.mxu0 0.0
    %1070 = vmatpush1.xpose.msra.mxu0 0.0
    %1071 = vmatprep.subr.mxu0 0.0
    %1072 = vmatpush1.xpose.msra.mxu0 0.0
    %1073 = vmatprep.mubr.f32.mxu0 0.0
    %v1074 = vand.u32 %v573, 4294901760
    %1075 = vmatmul.mubr.f32.gmra.mrb[0].mxu0 %v1074
    %v1076 = vpop.f32.mrb[0].mxu0
    %v1077 = vadd.f32 %v998, %v1076
    %v1078 = vpop.f32.mrb[0].mxu0
    %1079 = vmatprep.mubr.f32.mxu0 0.0
    %v1080 = vand.u32 %v576, 4294901760
    %1081 = vmatmul.mubr.f32.gmra.mrb[0].mxu0 %v1080
    %v1082 = vpop.f32.mrb[0].mxu0
    %v1083 = vadd.f32 %v1004, %v1082
    %v1084 = vpop.f32.mrb[0].mxu0
    %1085 = vdwg.mxu0
    %v1086 = vmax.f32 %v561, %v1077
    %v1087 = vmax.f32 %v567, %v1083
    %vm1088 = vcmask 130048
    %v1089 = vsel %vm1088, %v1086, 0.0
    %1090 = vadd.xlane.f32.xlu0 %v1089
    %v1091 = vpop.xlane.xlu0 %1090
    %v1092 = vsel %vm1088, %v1087, 0.0
    %1093 = vadd.xlane.f32.xlu0 %v1092
    %v1094 = vpop.xlane.xlu0 %1093
    %v1095 = vadd.f32 %v1089, %v1092
    %v1096 = vrot.slane %v1095, 4
    %v1097 = vadd.f32 %v1095, %v1096
    %v1098 = vrot.slane %v1097, 2
    %v1099 = vadd.f32 %v1097, %v1098
    %v1100 = vrot.slane %v1099, 1
    %v1101 = vadd.f32 %v1099, %v1100
    %v1102 = vrsqrt.pop %v1091
    %v1103 = vmul.f32 %v1091, %v1102
    %vm1104 = vcmp.eq.f32.partialorder %v1091, inf
    %v1105 = vsel %vm1104, %v1091, %v1103
    %vm1106 = vcmp.eq.f32.partialorder %v1091, 0.0
    %v1107 = vand.u32 %v1091, 2147483648
    %v1108 = vsel %vm1106, %v1107, %v1105
    %v1109 = vrsqrt.pop %v1094
    %v1110 = vmul.f32 %v1094, %v1109
    %vm1111 = vcmp.eq.f32.partialorder %v1094, inf
    %v1112 = vsel %vm1111, %v1094, %v1110
    %vm1113 = vcmp.eq.f32.partialorder %v1094, 0.0
    %v1114 = vand.u32 %v1094, 2147483648
    %v1115 = vsel %vm1113, %v1114, %v1112
    %v1116 = vadd.f32 %v1108, 1e-08
    %v1117 = vadd.f32 %v1115, 1e-08
    %v1118 = vrcp.pop %v1116
    %v1119 = vmul.f32 1.0, %v1118
    %v1120 = vrcp.pop %v1117
    %v1121 = vmul.f32 1.0, %v1120
    %v1122 = vrsqrt.pop %v1101
    %v1123 = vmul.f32 %v1101, %v1122
    %vm1124 = vcmp.eq.f32.partialorder %v1101, inf
    %v1125 = vsel %vm1124, %v1101, %v1123
    %vm1126 = vcmp.eq.f32.partialorder %v1101, 0.0
    %v1127 = vand.u32 %v1101, 2147483648
    %v1128 = vsel %vm1126, %v1127, %v1125
    %v1129 = vadd.f32 %v1128, 1e-08
    %v1130 = vrcp.pop %v1129
    %v1131 = vmul.f32 1.0, %v1130
    %v1132 = vmul.f32 %v1119, %v1086
    %v1133 = vmul.f32 %v1121, %v1087
    %v1134 = vmul.f32 %v1132, %v1131
    %v1135 = vmul.f32 %v1133, %v1131
    %1136 = vst.msk [vmem:[#allocation2] sm:$0xff] %vm1088, %v1134
    %1137 = vst.msk [vmem:[#allocation2 + $0x8] sm:$0xff] %vm1088, %v1135
    %v1138 = vld [vmem:[%s3] sm:$0xff]
    %v1139 = vld [vmem:[%s3 + $0x8] sm:$0xff]
    %vm1140 = vcmask 261120
    %v1141 = vsel %vm1140, %v1138, 0.0
    %v1142 = vsel %vm1140, %v1139, 0.0
    %v1143 = vadd.f32 %v1141, %v1142
    %v1144 = vrot.slane %v1143, 4
    %v1145 = vadd.f32 %v1143, %v1144
    %v1146 = vrot.slane %v1145, 2
    %v1147 = vadd.f32 %v1145, %v1146
    %v1148 = vrot.slane %v1147, 1
    %v1149 = vadd.f32 %v1147, %v1148
    %v1150 = vmul.f32 %v1149, 0.0625
    %vm1151 = vcmask 253952
    %1152 = vst.msk [vmem:[#allocation4] sm:$0x1] %vm1151, %v1150
    // Predicated region
    $region18: #{_fused_forward.1} parent=1 // pred_check
      _
    $region19: #{_fused_forward.1} parent=1 // pred_check_branch
      %1154 = sbr.rel (0) target = $region21
    $region20: #{_fused_forward.1} parent=1 // pred_region
      %s1156 = ssub.s32 256, 256
      %1157 = vsyncadd [#allocation3], %s1156
      %s1158 = sshll.u32 [#allocation2], 4
      %s1159 = int_to_ptr.vmem [resolvable:$true] %s1158
      %1164 = dma.vmem_to_hbm [thread:$0]  %s1159, 256, %s4, [#allocation3], 128, 128, 8
    $region21: #{_fused_forward.1} parent=1 // pred_fallthru
      _
    // Predicated region
    $region22: #{_fused_forward.1} parent=1 // pred_check
      _
    $region23: #{_fused_forward.1} parent=1 // pred_check_branch
      %1166 = sbr.rel (0) target = $region25
    $region24: #{_fused_forward.1} parent=1 // pred_region
      %s1168 = ssub.s32 16, 16
      %1169 = vsyncadd [#allocation5], %s1168
      %s1171 = sshll.u32 [#allocation4], 4
      %s1172 = int_to_ptr.vmem [resolvable:$true] %s1171
      %1174 = dma.vmem_to_hbm [thread:$0]  %s1172, 16, %s5, [#allocation5]
    $region25: #{_fused_forward.1} parent=1 // pred_fallthru
      _
    // Predicated region
    $region26: #{_fused_forward.1} parent=1 // pred_check
      _
    $region27: #{_fused_forward.1} parent=1 // pred_check_branch
      %1176 = sbr.rel (0) target = $region29
    $region28: #{_fused_forward.1} parent=1 // pred_region
      %1177 = dma.done [#allocation3], 256
    $region29: #{_fused_forward.1} parent=1 // pred_fallthru
      _
    // Predicated region
    $region30: #{_fused_forward.1} parent=1 // pred_check
      _
    $region31: #{_fused_forward.1} parent=1 // pred_check_branch
      %1179 = sbr.rel (0) target = $region33
    $region32: #{_fused_forward.1} parent=1 // pred_region
      %1180 = dma.done [#allocation5], 16
    $region33: #{_fused_forward.1} parent=1 // pred_fallthru
      _
    %1181 = vsyncpa [#allocation3], 1
    %1182 = vsyncpa [#allocation5], 1

</llo_original>
